<compile_context>
chip_gen: v7x
topology: tpu7x:2x2x1
jax: 0.10.0
libtpu: 0.0.40
codegen_flags: <defaults>
</compile_context>

<pallas_src>
import jax
import jax.numpy as jnp
from jax import lax
from jax.experimental import pallas as pl
from jax.experimental.pallas import tpu as pltpu


def _round_up(value, multiple):
    return (value + multiple - 1) // multiple * multiple


# ---------------------------------------------------------------------------
# Kernel 1: RBF skinning weights + MXU-blended node affines -> grid-space coords
# ---------------------------------------------------------------------------
def _blend_coords_kernel(pts_ref, nodep_ref, coef_ref, out_ref):
    # pts_ref  : [3, TP]   surface points (rows = x, y, z), lane-dense over points
    # nodep_ref: [N, 8]    per-node params (cx, cy, cz, gamma, log_const, pad, pad, pad)
    # coef_ref : [8, 4N]   per-batch coefficient matrix (rows 0-2: affine, row 3: ones)
    # out_ref  : [3, TP]   voxel-space coordinates (rows = x, y, z)
    x = pts_ref[0:1, :]
    y = pts_ref[1:2, :]
    z = pts_ref[2:3, :]

    nodep = nodep_ref[...]
    cx = nodep[:, 0:1]
    cy = nodep[:, 1:2]
    cz = nodep[:, 2:3]
    gam = nodep[:, 3:4]
    logc = nodep[:, 4:5]

    dx = x - cx                                               # [N, TP] broadcast
    dy = y - cy
    dz = z - cz
    logits = logc - (dx * dx + dy * dy + dz * dz) * gam       # log(c_n) - d2 / (2 s_n^2)
    # Max-shift per point: cancels exactly in the normalization below and prevents
    # exp underflow -> sum_w == 0 -> NaN (correctness concern from the review).
    logits = logits - jnp.max(logits, axis=0, keepdims=True)
    w = jnp.exp(logits)                                       # [N, TP], column sums >= 1

    # MXU blend: rows 0..2 give the unnormalized q, row 3 (ones block) gives sum_w.
    g = jnp.concatenate([w * x, w * y, w * z, w], axis=0)     # [4N, TP]
    res = jnp.dot(coef_ref[...], g,
                  preferred_element_type=jnp.float32,
                  precision=lax.Precision.HIGHEST)            # [8, TP]

    inv = 1.0 / res[3:4, :]                                   # single-row exact reciprocal
    out_ref[...] = res[0:3, :] * inv                          # one lane-dense store


# ---------------------------------------------------------------------------
# Plain-JAX glue: trilinear sampling with border clamp (== grid_sample with
# align_corners=True, padding_mode='border' after the module's normalization).
# ---------------------------------------------------------------------------
def _trilinear_border(vol, coords):
    # vol: [dz, dy, dx]; coords: [3, P] voxel-space (x, y, z)
    dz, dy, dx = vol.shape
    x = jnp.clip(coords[0], 0.0, dx - 1.0)
    y = jnp.clip(coords[1], 0.0, dy - 1.0)
    z = jnp.clip(coords[2], 0.0, dz - 1.0)
    x0 = jnp.floor(x)
    y0 = jnp.floor(y)
    z0 = jnp.floor(z)
    x0i = x0.astype(jnp.int32)
    y0i = y0.astype(jnp.int32)
    z0i = z0.astype(jnp.int32)
    x1i = jnp.minimum(x0i + 1, dx - 1)
    y1i = jnp.minimum(y0i + 1, dy - 1)
    z1i = jnp.minimum(z0i + 1, dz - 1)
    fx = x - x0
    fy = y - y0
    fz = z - z0

    def g(zi, yi, xi):
        return vol[zi, yi, xi]

    c000 = g(z0i, y0i, x0i)
    c001 = g(z0i, y0i, x1i)
    c010 = g(z0i, y1i, x0i)
    c011 = g(z0i, y1i, x1i)
    c100 = g(z1i, y0i, x0i)
    c101 = g(z1i, y0i, x1i)
    c110 = g(z1i, y1i, x0i)
    c111 = g(z1i, y1i, x1i)

    c00 = c000 * (1.0 - fx) + c001 * fx
    c01 = c010 * (1.0 - fx) + c011 * fx
    c10 = c100 * (1.0 - fx) + c101 * fx
    c11 = c110 * (1.0 - fx) + c111 * fx
    c0 = c00 * (1.0 - fy) + c01 * fy
    c1 = c10 * (1.0 - fy) + c11 * fy
    return c0 * (1.0 - fz) + c1 * fz


# ---------------------------------------------------------------------------
# Wrapper: SurfaceConsistencyLoss.forward
# ---------------------------------------------------------------------------
def surface_consistency_loss(constants, scales, rotations, centers,
                             surface_samples, grid, world2grid,
                             use_constants=True, tile_p=None):
    f32 = jnp.float32
    hp = lax.Precision.HIGHEST

    constants = constants.astype(f32)
    scales = scales.astype(f32)
    rotations = rotations.astype(f32)
    centers = centers.astype(f32)
    grid = grid.astype(f32)
    world2grid = world2grid.astype(f32)

    B, N, _ = centers.shape
    P = surface_samples.shape[1]
    pts = surface_samples[:, :, :3].astype(f32)                      # [B, P, 3]

    # ---- O(B*N) per-pair precompute (tiny; plain JAX) ----------------------
    tgt = (jnp.arange(B) + 1) % B                                    # target index per source
    t_src = centers
    t_tgt = centers[tgt]
    # R_rel = R_target @ R_source^T per node
    R_rel = jnp.einsum('bnij,bnkj->bnik', rotations[tgt], rotations, precision=hp)
    A_w2g = world2grid[tgt, :3, :3]                                  # [B, 3, 3]
    t_w2g = world2grid[tgt, :3, 3]                                   # [B, 3]
    # Fold world2grid into each node affine (weights sum to 1, so t_w2g folds too):
    #   q = sum_n wn * (A_w2g R_rel_n x + A_w2g (t_tgt_n - R_rel_n t_src_n) + t_w2g)
    A_node = jnp.einsum('bij,bnjk->bnik', A_w2g, R_rel, precision=hp)             # [B,N,3,3]
    shift = t_tgt - jnp.einsum('bnij,bnj->bni', R_rel, t_src, precision=hp)        # [B,N,3]
    b_node = jnp.einsum('bij,bnj->bni', A_w2g, shift, precision=hp) + t_w2g[:, None, :]

    # Coefficient matrix for the in-kernel MXU blend: [B, 8, 4N]
    #   row i (i=0..2): [a_{i0,n}]_n, [a_{i1,n}]_n, [a_{i2,n}]_n, [b_{i,n}]_n
    #   row 3         : zeros, zeros, zeros, ones   -> yields sum_w
    A_perm = jnp.transpose(A_node, (0, 2, 3, 1)).reshape(B, 3, 3 * N)   # j-major, n-minor
    b_perm = jnp.transpose(b_node, (0, 2, 1))                           # [B, 3, N]
    coef_top = jnp.concatenate([A_perm, b_perm], axis=-1)               # [B, 3, 4N]
    row_sum = jnp.concatenate([jnp.zeros((B, 1, 3 * N), f32),
                               jnp.ones((B, 1, N), f32)], axis=-1)      # [B, 1, 4N]
    coef = jnp.concatenate([coef_top, row_sum,
                            jnp.zeros((B, 4, 4 * N), f32)], axis=1)     # [B, 8, 4N]

    # Per-node scalar params merged into a single [B, N, 8] buffer (one DMA per step).
    gamma = 1.0 / (2.0 * scales * scales)                               # [B, N]
    log_cst = jnp.log(constants) if use_constants else jnp.zeros_like(constants)
    zeros_n = jnp.zeros_like(gamma)
    node_params = jnp.stack(
        [centers[..., 0], centers[..., 1], centers[..., 2],
         gamma, log_cst, zeros_n, zeros_n, zeros_n], axis=-1)           # [B, N, 8]

    # ---- lane-dense [B, 3, P] point layout, padded to a multiple of TILE_P --
    # Tile sizing: keep ~6 live [N, tile] f32 temps within the 64 x 4 KiB vreg file
    # (all generations); keeps VMEM per step far below the 32 MiB scoped default.
    if tile_p is None:
        tile_p = max(256, min(2048, (64 * 1024 // (6 * max(N, 1))) // 128 * 128))
    p128 = _round_up(P, 128)
    tile = min(p128, int(tile_p))
    p_pad = _round_up(P, tile)
    pts_t = jnp.transpose(pts, (0, 2, 1))                               # [B, 3, P]
    if p_pad != P:
        pts_t = jnp.pad(pts_t, ((0, 0), (0, 0), (0, p_pad - P)), mode='edge')

    num_tiles = p_pad // tile
    coords = pl.pallas_call(
        _blend_coords_kernel,
        out_shape=jax.ShapeDtypeStruct((B, 3, p_pad), f32),
        # Point-tile axis first so v7x's 2 TensorCores shard the point tiles even if B==1.
        grid=(num_tiles, B),
        in_specs=[
            pl.BlockSpec((None, 3, tile), lambda t, b: (b, 0, t)),      # points
            pl.BlockSpec((None, N, 8), lambda t, b: (b, 0, 0)),         # per-node params
            pl.BlockSpec((None, 8, 4 * N), lambda t, b: (b, 0, 0)),     # MXU coefficients
        ],
        out_specs=pl.BlockSpec((None, 3, tile), lambda t, b: (b, 0, t)),
        compiler_params=pltpu.CompilerParams(
            dimension_semantics=("parallel", "parallel")),
    )(pts_t, node_params, coef)

    coords = coords[:, :, :P]                                           # [B, 3, P]

    # TODO(synk): grid_sample's trilinear lookup needs per-point data-dependent
    # gathers from the SDF volume; kept in plain JAX (no clean Pallas TPU gather).
    sdf = jax.vmap(_trilinear_border)(grid[tgt], coords)                # [B, P]

    # Final reduction left to XLA per the perf review: it fuses with the gather
    # consumer and avoids a separate overhead-bound Pallas launch + sdf HBM round trip.
    return jnp.sum(sdf * sdf) / jnp.float32(P)


# ---------------------------------------------------------------------------
# Pure-JAX reference mirroring the PyTorch forward (for the sanity check)
# ---------------------------------------------------------------------------
def _reference(constants, scales, rotations, centers, surface_samples, grid,
               world2grid, use_constants=True):
    f32 = jnp.float32
    hp = lax.Precision.HIGHEST
    constants = constants.astype(f32)
    scales = scales.astype(f32)
    rotations = rotations.astype(f32)
    centers = centers.astype(f32)
    grid = grid.astype(f32)
    world2grid = world2grid.astype(f32)

    B = constants.shape[0]
    pts = surface_samples[:, :, :3].astype(f32)                      # [B, P, 3]

    # sample_rbf_weights (assumed convention, same as the kernel path)
    d2 = jnp.sum((pts[:, :, None, :] - centers[:, None, :, :]) ** 2, axis=-1)  # [B,P,N]
    w = jnp.exp(-d2 / (2.0 * (scales[:, None, :] ** 2)))
    if use_constants:
        w = w * constants[:, None, :]

    loss = jnp.float32(0.0)
    for s in range(B):
        t = s + 1 if s < B - 1 else 0
        R_rel = jnp.einsum('nij,nkj->nik', rotations[t], rotations[s], precision=hp)
        ws = w[s] / jnp.sum(w[s], axis=1, keepdims=True)             # [P, N]
        local = pts[s][:, None, :] - centers[s][None, :, :]          # [P, N, 3]
        moved = (jnp.einsum('nij,pnj->pni', R_rel, local, precision=hp)
                 + centers[t][None, :, :])
        tp = jnp.sum(ws[:, :, None] * moved, axis=1)                 # [P, 3]
        A = world2grid[t, :3, :3]
        bvec = world2grid[t, :3, 3]
        q = jnp.einsum('ij,pj->pi', A, tp, precision=hp) + bvec[None, :]
        sdf = _trilinear_border(grid[t], q.T)
        loss = loss + jnp.mean(sdf * sdf)
    return loss


if __name__ == "__main__":
    key = jax.random.PRNGKey(0)
    ks = jax.random.split(key, 7)

    B, N, P = 2, 16, 256
    DZ, DY, DX = 8, 10, 12

    centers = 0.8 * jax.random.normal(ks[0], (B, N, 3), dtype=jnp.float32)
    constants = jax.random.uniform(ks[1], (B, N), minval=0.5, maxval=1.5,
                                   dtype=jnp.float32)
    scales = jax.random.uniform(ks[2], (B, N), minval=0.4, maxval=0.9,
                                dtype=jnp.float32)
    eye = jnp.eye(3, dtype=jnp.float32)
    rotations = eye[None, None] + 0.1 * jax.random.normal(
        ks[3], (B, N, 3, 3), dtype=jnp.float32)
    surface_samples = jnp.concatenate(
        [jax.random.normal(ks[4], (B, P, 3), dtype=jnp.float32),
         jax.random.normal(ks[5], (B, P, 3), dtype=jnp.float32)], axis=-1)
    grid = jax.random.normal(ks[6], (B, DZ, DY, DX), dtype=jnp.float32)

    # world2grid: scale + shift mapping world coords roughly into the grid interior
    w2g = []
    for _ in range(B):
        A = jnp.diag(jnp.array([(DX - 1) / 4.0, (DY - 1) / 4.0, (DZ - 1) / 4.0],
                               dtype=jnp.float32))
        tvec = jnp.array([(DX - 1) / 2.0, (DY - 1) / 2.0, (DZ - 1) / 2.0],
                         dtype=jnp.float32)
        m = jnp.concatenate(
            [jnp.concatenate([A, tvec[:, None]], axis=1),
             jnp.array([[0.0, 0.0, 0.0, 1.0]], dtype=jnp.float32)], axis=0)
        w2g.append(m)
    world2grid = jnp.stack(w2g, axis=0)

    loss = surface_consistency_loss(constants, scales, rotations, centers,
                                    surface_samples, grid, world2grid,
                                    use_constants=True)
    loss = jax.block_until_ready(loss)

    ref = _reference(constants, scales, rotations, centers, surface_samples,
                     grid, world2grid, use_constants=True)
    ref = jax.block_until_ready(ref)

    assert bool(jnp.isfinite(loss)), loss
    assert jnp.allclose(loss, ref, rtol=1e-3, atol=1e-3), (loss, ref)
    print("KERNEL_OK")
</pallas_src>

<mosaic_0001>
module attributes {stable_mosaic.version = 11 : i64} {
  func.func @_blend_coords_kernel(%arg0: i32, %arg1: i32, %arg2: memref<1x3x256xf32, #tpu.memory_space<vmem>>, %arg3: memref<1x16x8xf32, #tpu.memory_space<vmem>>, %arg4: memref<1x8x64xf32, #tpu.memory_space<vmem>>, %arg5: memref<1x3x256xf32, #tpu.memory_space<vmem>>) attributes {dimension_semantics = [#tpu.dimension_semantics<parallel>, #tpu.dimension_semantics<parallel>], iteration_bounds = array<i64: 1, 2>, scalar_prefetch = 0 : i64, scratch_operands = 0 : i64, tpu.core_type = #tpu.core_type<tc>, window_params = [{transform_indices = @transform_0, window_bounds = array<i64: 1, 3, 256>}, {transform_indices = @transform_1, window_bounds = array<i64: 1, 16, 8>}, {transform_indices = @transform_2, window_bounds = array<i64: 1, 8, 64>}, {transform_indices = @transform_3, window_bounds = array<i64: 1, 3, 256>}]} {
    %c0 = arith.constant 0 : index
    %c0_0 = arith.constant 0 : index
    %c0_1 = arith.constant 0 : index
    %0 = vector.load %arg2[%c0, %c0_0, %c0_1] : memref<1x3x256xf32, #tpu.memory_space<vmem>>, vector<1x1x256xf32>
    %1 = vector.shape_cast %0 : vector<1x1x256xf32> to vector<1x256xf32>
    %c0_2 = arith.constant 0 : index
    %c1 = arith.constant 1 : index
    %c0_3 = arith.constant 0 : index
    %2 = vector.load %arg2[%c0_2, %c1, %c0_3] : memref<1x3x256xf32, #tpu.memory_space<vmem>>, vector<1x1x256xf32>
    %3 = vector.shape_cast %2 : vector<1x1x256xf32> to vector<1x256xf32>
    %c0_4 = arith.constant 0 : index
    %c2 = arith.constant 2 : index
    %c0_5 = arith.constant 0 : index
    %4 = vector.load %arg2[%c0_4, %c2, %c0_5] : memref<1x3x256xf32, #tpu.memory_space<vmem>>, vector<1x1x256xf32>
    %5 = vector.shape_cast %4 : vector<1x1x256xf32> to vector<1x256xf32>
    %c0_6 = arith.constant 0 : index
    %c0_7 = arith.constant 0 : index
    %c0_8 = arith.constant 0 : index
    %6 = vector.load %arg3[%c0_6, %c0_7, %c0_8] : memref<1x16x8xf32, #tpu.memory_space<vmem>>, vector<1x16x8xf32>
    %7 = vector.shape_cast %6 : vector<1x16x8xf32> to vector<16x8xf32>
    %8 = vector.extract_strided_slice %7 {offsets = [0, 0], sizes = [16, 1], strides = [1, 1]} : vector<16x8xf32> to vector<16x1xf32>
    %9 = vector.extract_strided_slice %7 {offsets = [0, 1], sizes = [16, 1], strides = [1, 1]} : vector<16x8xf32> to vector<16x1xf32>
    %10 = vector.extract_strided_slice %7 {offsets = [0, 2], sizes = [16, 1], strides = [1, 1]} : vector<16x8xf32> to vector<16x1xf32>
    %11 = vector.extract_strided_slice %7 {offsets = [0, 3], sizes = [16, 1], strides = [1, 1]} : vector<16x8xf32> to vector<16x1xf32>
    %12 = vector.extract_strided_slice %7 {offsets = [0, 4], sizes = [16, 1], strides = [1, 1]} : vector<16x8xf32> to vector<16x1xf32>
    %13 = vector.broadcast %1 : vector<1x256xf32> to vector<16x256xf32>
    %14 = vector.broadcast %8 : vector<16x1xf32> to vector<16x256xf32>
    %15 = arith.subf %13, %14 : vector<16x256xf32>
    %16 = vector.broadcast %3 : vector<1x256xf32> to vector<16x256xf32>
    %17 = vector.broadcast %9 : vector<16x1xf32> to vector<16x256xf32>
    %18 = arith.subf %16, %17 : vector<16x256xf32>
    %19 = vector.broadcast %5 : vector<1x256xf32> to vector<16x256xf32>
    %20 = vector.broadcast %10 : vector<16x1xf32> to vector<16x256xf32>
    %21 = arith.subf %19, %20 : vector<16x256xf32>
    %22 = arith.mulf %15, %15 : vector<16x256xf32>
    %23 = arith.mulf %18, %18 : vector<16x256xf32>
    %24 = arith.addf %22, %23 : vector<16x256xf32>
    %25 = arith.mulf %21, %21 : vector<16x256xf32>
    %26 = arith.addf %24, %25 : vector<16x256xf32>
    %27 = vector.broadcast %11 : vector<16x1xf32> to vector<16x256xf32>
    %28 = arith.mulf %26, %27 : vector<16x256xf32>
    %29 = vector.broadcast %12 : vector<16x1xf32> to vector<16x256xf32>
    %30 = arith.subf %29, %28 : vector<16x256xf32>
    %cst = arith.constant dense<0xFF800000> : vector<256xf32>
    %31 = vector.multi_reduction <maximumf>, %30, %cst [0] : vector<16x256xf32> to vector<256xf32>
    %32 = vector.shape_cast %31 : vector<256xf32> to vector<1x256xf32>
    %33 = vector.broadcast %32 : vector<1x256xf32> to vector<16x256xf32>
    %34 = arith.subf %30, %33 : vector<16x256xf32>
    %35 = math.exp %34 : vector<16x256xf32>
    %36 = vector.broadcast %1 : vector<1x256xf32> to vector<16x256xf32>
    %37 = arith.mulf %35, %36 : vector<16x256xf32>
    %38 = vector.broadcast %3 : vector<1x256xf32> to vector<16x256xf32>
    %39 = arith.mulf %35, %38 : vector<16x256xf32>
    %40 = vector.broadcast %5 : vector<1x256xf32> to vector<16x256xf32>
    %41 = arith.mulf %35, %40 : vector<16x256xf32>
    %42 = tpu.concatenate %37, %39, %41, %35 in 0 : vector<16x256xf32>, vector<16x256xf32>, vector<16x256xf32>, vector<16x256xf32> -> vector<64x256xf32>
    %c0_9 = arith.constant 0 : index
    %c0_10 = arith.constant 0 : index
    %c0_11 = arith.constant 0 : index
    %43 = vector.load %arg4[%c0_9, %c0_10, %c0_11] : memref<1x8x64xf32, #tpu.memory_space<vmem>>, vector<1x8x64xf32>
    %44 = vector.shape_cast %43 : vector<1x8x64xf32> to vector<8x64xf32>
    %cst_12 = arith.constant dense<0.000000e+00> : vector<8x256xf32>
    %45 = tpu.matmul %44, %42, %cst_12 {dimension_numbers = #tpu.dot_dimension_numbers<[1], [0], [0], [1], [0, 0, 1, 1], [], []>, precision = #tpu.contract_precision<fp32>} : vector<8x64xf32>, vector<64x256xf32>, vector<8x256xf32> -> vector<8x256xf32>
    %46 = vector.extract_strided_slice %45 {offsets = [3, 0], sizes = [1, 256], strides = [1, 1]} : vector<8x256xf32> to vector<1x256xf32>
    %cst_13 = arith.constant 1.000000e+00 : f32
    %47 = vector.broadcast %cst_13 : f32 to vector<1x256xf32>
    %48 = arith.divf %47, %46 : vector<1x256xf32>
    %49 = vector.extract_strided_slice %45 {offsets = [0, 0], sizes = [3, 256], strides = [1, 1]} : vector<8x256xf32> to vector<3x256xf32>
    %50 = vector.broadcast %48 : vector<1x256xf32> to vector<3x256xf32>
    %51 = arith.mulf %49, %50 : vector<3x256xf32>
    %c0_14 = arith.constant 0 : index
    %c0_15 = arith.constant 0 : index
    %c0_16 = arith.constant 0 : index
    %52 = vector.load %arg5[%c0_14, %c0_15, %c0_16] : memref<1x3x256xf32, #tpu.memory_space<vmem>>, vector<1x3x256xf32>
    %53 = vector.shape_cast %52 : vector<1x3x256xf32> to vector<3x256xf32>
    %54 = vector.shape_cast %51 : vector<3x256xf32> to vector<1x3x256xf32>
    tpu.vector_store %arg5[%c0_14, %c0_15, %c0_16], %54 {strides = array<i32>} : memref<1x3x256xf32, #tpu.memory_space<vmem>>, vector<1x3x256xf32>,
    return
  }
  func.func @transform_0(%arg0: i32, %arg1: i32) -> (i32, i32, i32) {
    %c0_i32 = arith.constant 0 : i32
    %c0_i32_0 = arith.constant 0 : i32
    return %arg1, %c0_i32, %arg0 : i32, i32, i32
  }
  func.func @transform_1(%arg0: i32, %arg1: i32) -> (i32, i32, i32) {
    %c0_i32 = arith.constant 0 : i32
    %c0_i32_0 = arith.constant 0 : i32
    %c0_i32_1 = arith.constant 0 : i32
    return %arg1, %c0_i32, %c0_i32_0 : i32, i32, i32
  }
  func.func @transform_2(%arg0: i32, %arg1: i32) -> (i32, i32, i32) {
    %c0_i32 = arith.constant 0 : i32
    %c0_i32_0 = arith.constant 0 : i32
    %c0_i32_1 = arith.constant 0 : i32
    return %arg1, %c0_i32, %c0_i32_0 : i32, i32, i32
  }
  func.func @transform_3(%arg0: i32, %arg1: i32) -> (i32, i32, i32) {
    %c0_i32 = arith.constant 0 : i32
    %c0_i32_0 = arith.constant 0 : i32
    return %arg1, %c0_i32, %arg0 : i32, i32, i32
  }
}

</mosaic_0001>

<llo_original>
// kernel: tpu_custom_call.1
$region0: #{tpu_custom_call.1}
  #allocation0 [shape = 'u32[]', space=smem, size = 0x4, offset = 0x4, fixed_abs, tag = 'smem constant byte address 0x4 - core index']
  #allocation1 [shape = 'u32[144,128]{1,0:T(1,128)}', space=vmem, size = 0x12000, scoped, tag = 'internal scratch']
  %s0 = inlined_call_operand.vmem [shape: f32[2,3,256], index: 0, kind: input, shape index: {}]
  %s1 = inlined_call_operand.vmem [shape: f32[2,16,8], index: 1, kind: input, shape index: {}]
  %s2 = inlined_call_operand.vmem [shape: f32[2,8,64], index: 2, kind: input, shape index: {}]
  %s3 = inlined_call_operand.vmem [shape: f32[2,3,256], index: 3, kind: output, shape index: {}]
  %s4 = sld [smem:[#allocation0]]
  $region45: #{tpu_custom_call.1} parent=0
    _
  %s6 = ssub.s32 1, %s4
  %s7 = scalar_select 0, %s6, %s4
  loop: start=0, step=1, limit=4
  $region2: #{tpu_custom_call.1} parent=0 // loop_pre_header
    _
  $region3: #{tpu_custom_call.1} parent=0 // loop_header
    %s9 = sphi 0, %s13
    %p10 = scmp.ge.s32.totalorder %s9, 4
    %s16 = sphi 0, %s28
    %s17 = sphi 0, %s24
    %s18 = sphi 0, %s16
    %s19 = sphi 0, %s17
    %s20 = sphi 0, %s18
    %s21 = sphi 0, %s19
    %s33 = sphi 0, %s35
    %s36 = sphi 0, %s33
    %s37 = sphi 0, %s36
    %s53 = sphi 0, %s37
    %s59 = sphi 0, %s61
    %s62 = sphi 0, %s59
    %s63 = sphi 0, %s62
    %s79 = sphi 0, %s63
    %s85 = sphi 0, %s87
    %s88 = sphi 0, %s85
    %s89 = sphi 0, %s88
    %s105 = sphi 0, %s89
    %s113 = sphi 0, %s115
    %s116 = sphi 0, %s113
    %s117 = sphi 0, %s116
    %s133 = sphi 0, %s117
  $region4: #{tpu_custom_call.1} parent=0 // loop_header_branch
    %12 = sbr.rel (%p10) target = $region8
  $region5: #{tpu_custom_call.1} parent=0 // loop_body
    %s14 = ssub.s32 %s9, 1
    %s15 = ssub.s32 %s9, 2
    %s22 = sadd.s32 1, %s17
    %p23 = scmp.ge.s32.totalorder %s22, 2
    %s24 = scalar_select %p23, 0, %s22
    %s25 = sadd.s32 1, %s16
    %s26 = scalar_select %p23, %s25, %s16
    %p27 = scmp.ge.s32.totalorder %s26, 1
    %s28 = scalar_select %p27, 0, %s26
    %s29 = ssub.s32 %s17, %s24
    %s30 = ssub.s32 %s16, %s28
    %s31 = sor.u32 %s29, %s30
    %p32 = scmp.eq.s32.totalorder %s31, 0
    %s34 = sadd.s32 %s33, 1
    %s35 = scalar_select %p32, %s33, %s34
    %p38 = pneg %p32
    %p39 = scmp.eq.s32.totalorder %s9, 1
    %p40 = por %p38, %p39
    %p41 = scmp.ne.s32.totalorder %s33, %s36
    %p42 = scmp.eq.s32.totalorder %s9, 0
    %p43 = por %p41, %p42
    %p44 = scmp.ne.s32.totalorder %s33, %s36
    %p45 = scmp.eq.s32.totalorder %s14, 1
    %p46 = por %p44, %p45
    %p47 = scmp.ne.s32.totalorder %s36, %s37
    %p48 = scmp.eq.s32.totalorder %s14, 0
    %p49 = por %p47, %p48
    %p50 = scmp.ne.s32.totalorder %s36, %s37
    %p51 = scmp.eq.s32.totalorder %s15, 1
    %p52 = por %p50, %p51
    %p54 = scmp.ne.s32.totalorder %s37, %s53
    %p55 = scmp.eq.s32.totalorder %s15, 0
    %p56 = por %p54, %p55
    %s57 = ssub.s32 %s17, %s24
    %p58 = scmp.eq.s32.totalorder %s57, 0
    %s60 = sadd.s32 %s59, 1
    %s61 = scalar_select %p58, %s59, %s60
    %p64 = pneg %p58
    %p65 = scmp.eq.s32.totalorder %s9, 1
    %p66 = por %p64, %p65
    %p67 = scmp.ne.s32.totalorder %s59, %s62
    %p68 = scmp.eq.s32.totalorder %s9, 0
    %p69 = por %p67, %p68
    %p70 = scmp.ne.s32.totalorder %s59, %s62
    %p71 = scmp.eq.s32.totalorder %s14, 1
    %p72 = por %p70, %p71
    %p73 = scmp.ne.s32.totalorder %s62, %s63
    %p74 = scmp.eq.s32.totalorder %s14, 0
    %p75 = por %p73, %p74
    %p76 = scmp.ne.s32.totalorder %s62, %s63
    %p77 = scmp.eq.s32.totalorder %s15, 1
    %p78 = por %p76, %p77
    %p80 = scmp.ne.s32.totalorder %s63, %s79
    %p81 = scmp.eq.s32.totalorder %s15, 0
    %p82 = por %p80, %p81
    %s83 = ssub.s32 %s17, %s24
    %p84 = scmp.eq.s32.totalorder %s83, 0
    %s86 = sadd.s32 %s85, 1
    %s87 = scalar_select %p84, %s85, %s86
    %p90 = pneg %p84
    %p91 = scmp.eq.s32.totalorder %s9, 1
    %p92 = por %p90, %p91
    %p93 = scmp.ne.s32.totalorder %s85, %s88
    %p94 = scmp.eq.s32.totalorder %s9, 0
    %p95 = por %p93, %p94
    %p96 = scmp.ne.s32.totalorder %s85, %s88
    %p97 = scmp.eq.s32.totalorder %s14, 1
    %p98 = por %p96, %p97
    %p99 = scmp.ne.s32.totalorder %s88, %s89
    %p100 = scmp.eq.s32.totalorder %s14, 0
    %p101 = por %p99, %p100
    %p102 = scmp.ne.s32.totalorder %s88, %s89
    %p103 = scmp.eq.s32.totalorder %s15, 1
    %p104 = por %p102, %p103
    %p106 = scmp.ne.s32.totalorder %s89, %s105
    %p107 = scmp.eq.s32.totalorder %s15, 0
    %p108 = por %p106, %p107
    %s109 = ssub.s32 %s17, %s24
    %s110 = ssub.s32 %s16, %s28
    %s111 = sor.u32 %s109, %s110
    %p112 = scmp.eq.s32.totalorder %s111, 0
    %s114 = sadd.s32 %s113, 1
    %s115 = scalar_select %p112, %s113, %s114
    %p118 = pneg %p112
    %p119 = scmp.eq.s32.totalorder %s9, 1
    %p120 = por %p118, %p119
    %p121 = scmp.ne.s32.totalorder %s113, %s116
    %p122 = scmp.eq.s32.totalorder %s9, 0
    %p123 = por %p121, %p122
    %p124 = scmp.ne.s32.totalorder %s113, %s116
    %p125 = scmp.eq.s32.totalorder %s14, 1
    %p126 = por %p124, %p125
    %p127 = scmp.ne.s32.totalorder %s116, %s117
    %p128 = scmp.eq.s32.totalorder %s14, 0
    %p129 = por %p127, %p128
    %p130 = scmp.ne.s32.totalorder %s116, %s117
    %p131 = scmp.eq.s32.totalorder %s15, 1
    %p132 = por %p130, %p131
    %p134 = scmp.ne.s32.totalorder %s117, %s133
    %p135 = scmp.eq.s32.totalorder %s15, 0
    %p136 = por %p134, %p135
    %p137 = scmp.le.s32.totalorder 1, %s9
    %p138 = scmp.lt.s32.totalorder %s9, 3
    %p139 = pnand %p137, %p138
    %p140 = pneg %p139
    // Predicated region
    $region9: #{tpu_custom_call.1} parent=5 // pred_check
      _
    $region10: #{tpu_custom_call.1} parent=5 // pred_check_branch
      %142 = sbr.rel (%p139) target = $region12
    $region11: #{tpu_custom_call.1} parent=5 // pred_region
      %s143 = ssub.s32 %s9, 1
    $region12: #{tpu_custom_call.1} parent=5 // pred_fallthru
      _
    %p144 = scmp.lt.s32.totalorder %s9, 2
    // Predicated region
    $region13: #{tpu_custom_call.1} parent=5 // pred_check
      %p145 = pneg %p144
    $region14: #{tpu_custom_call.1} parent=5 // pred_check_branch
      %147 = sbr.rel (%p145) target = $region16
    $region15: #{tpu_custom_call.1} parent=5 // pred_region
      // Predicated region
      $region17: #{tpu_custom_call.1} parent=15 // pred_check
        %p148 = pneg %p43
      $region18: #{tpu_custom_call.1} parent=15 // pred_check_branch
        %150 = sbr.rel (%p148) target = $region20
      $region19: #{tpu_custom_call.1} parent=15 // pred_region
        %s151 = smul.u32 2, %s16
        %p152 = scmp.lt.s32.totalorder %s17, 1
        %s153 = scalar_select %p152, %s17, 1
        %p154 = scmp.lt.s32.totalorder %s151, 1
        %s155 = scalar_select %p154, %s151, 1
        %s156 = smul.addr %s153, 2
        %s157 = sadd.s32 %s155, %s156
        %s158 = smul.addr %s157, 4
        %s159 = scalar_lea.vmem %s0, %s158
        %s160 = smul.u32 2, %s16
      $region20: #{tpu_custom_call.1} parent=15 // pred_fallthru
        _
      // Predicated region
      $region21: #{tpu_custom_call.1} parent=15 // pred_check
        %p161 = pneg %p69
      $region22: #{tpu_custom_call.1} parent=15 // pred_check_branch
        %163 = sbr.rel (%p161) target = $region24
      $region23: #{tpu_custom_call.1} parent=15 // pred_region
        %p164 = scmp.lt.s32.totalorder %s17, 1
        %s165 = scalar_select %p164, %s17, 1
        %s166 = smul.addr %s165, 2
        %s167 = smul.addr %s166, 8
        %s168 = scalar_lea.vmem %s1, %s167
      $region24: #{tpu_custom_call.1} parent=15 // pred_fallthru
        _
      // Predicated region
      $region25: #{tpu_custom_call.1} parent=15 // pred_check
        %p169 = pneg %p95
      $region26: #{tpu_custom_call.1} parent=15 // pred_check_branch
        %171 = sbr.rel (%p169) target = $region28
      $region27: #{tpu_custom_call.1} parent=15 // pred_region
        %p172 = scmp.lt.s32.totalorder %s17, 1
        %s173 = scalar_select %p172, %s17, 1
        %s174 = smul.addr %s173, 8
        %s175 = scalar_lea.vmem %s2, %s174
      $region28: #{tpu_custom_call.1} parent=15 // pred_fallthru
        _
    $region16: #{tpu_custom_call.1} parent=5 // pred_fallthru
      _
    %p176 = scmp.le.s32.totalorder 1, %s9
    %p177 = scmp.lt.s32.totalorder %s9, 3
    %p178 = pnand %p176, %p177
    %p179 = pneg %p178
    // Predicated region
    $region29: #{tpu_custom_call.1} parent=5 // pred_check
      _
    $region30: #{tpu_custom_call.1} parent=5 // pred_check_branch
      %181 = sbr.rel (%p178) target = $region32
    $region31: #{tpu_custom_call.1} parent=5 // pred_region
      %s182 = ssub.s32 %s9, 1
      %s183 = smul.u32 2, %s18
      %p184 = scmp.lt.s32.totalorder %s19, 1
      %s185 = scalar_select %p184, %s19, 1
      %p186 = scmp.lt.s32.totalorder %s183, 1
      %s187 = scalar_select %p186, %s183, 1
      %s188 = smul.addr %s185, 2
      %s189 = sadd.s32 %s187, %s188
      %s190 = smul.addr %s189, 4
      %s191 = scalar_lea.vmem %s0, %s190
      %p192 = pneg %p49
      %p193 = pneg %p46
      %p194 = scmp.lt.s32.totalorder %s19, 1
      %s195 = scalar_select %p194, %s19, 1
      %s196 = smul.addr %s195, 2
      %s197 = smul.addr %s196, 8
      %s198 = scalar_lea.vmem %s1, %s197
      %p199 = pneg %p75
      %p200 = pneg %p72
      %p201 = scmp.lt.s32.totalorder %s19, 1
      %s202 = scalar_select %p201, %s19, 1
      %s203 = smul.addr %s202, 8
      %s204 = scalar_lea.vmem %s2, %s203
      %p205 = pneg %p101
      %p206 = pneg %p98
      %p207 = pneg %p129
      %p208 = pneg %p126
      %s209 = smul.u32 2, %s18
      %p210 = scmp.lt.s32.totalorder %s19, 1
      %s211 = scalar_select %p210, %s19, 1
      %p212 = scmp.lt.s32.totalorder %s209, 1
      %s213 = scalar_select %p212, %s209, 1
      %s214 = smul.addr %s211, 2
      %s215 = sadd.s32 %s213, %s214
      %s216 = smul.addr %s215, 4
      %s217 = scalar_lea.vmem %s3, %s216
      %s218 = smul.u32 2, %s18
      %p219 = scmp.lt.s32.totalorder %s19, 1
      %s220 = scalar_select %p219, %s19, 1
      %p221 = scmp.lt.s32.totalorder %s218, 1
      %s222 = scalar_select %p221, %s218, 1
      %s223 = smul.addr %s220, 2
      %s224 = sadd.s32 %s222, %s223
      %s225 = smul.addr %s224, 4
      %s226 = scalar_lea.vmem %s0, %s225
      %s227 = smul.u32 2, %s18
      %p228 = scmp.lt.s32.totalorder %s19, 1
      %s229 = scalar_select %p228, %s19, 1
      %s230 = smul.addr %s229, 2
      %s231 = smul.addr %s230, 8
      %s232 = scalar_lea.vmem %s1, %s231
      %p233 = scmp.lt.s32.totalorder %s19, 1
      %s234 = scalar_select %p233, %s19, 1
      %s235 = smul.addr %s234, 8
      %s236 = scalar_lea.vmem %s2, %s235
      %s237 = smul.u32 2, %s18
      %p238 = scmp.lt.s32.totalorder %s19, 1
      %s239 = scalar_select %p238, %s19, 1
      %p240 = scmp.lt.s32.totalorder %s237, 1
      %s241 = scalar_select %p240, %s237, 1
      %s242 = smul.addr %s239, 2
      %s243 = sadd.s32 %s241, %s242
      %s244 = smul.addr %s243, 4
      %s245 = scalar_lea.vmem %s3, %s244
      %s246 = smul.u32 2, %s18
      %v247 = vld [vmem:[%s226] ss:$4 sm:$0x3]
      %s248 = scalar_lea.vmem %s226, 1
      %v249 = vld [vmem:[%s248] ss:$4 sm:$0x3]
      %s250 = scalar_lea.vmem %s226, 2
      %v251 = vld [vmem:[%s250] ss:$4 sm:$0x3]
      %v252 = vld [vmem:[%s232] sm:$0xff]
      %v253 = vld [vmem:[%s232 + $0x8] sm:$0xff]
      %v255 = vlaneseq
      %v256 = vshrl.u32 %v255, 7
      %v257 = vsub.s32 0, %v256
      %v258 = vrot.slane %v247, %v257
      %v259 = vlaneseq
      %v260 = vshrl.u32 %v259, 7
      %v261 = vsub.s32 1, %v260
      %v262 = vrot.slane %v247, %v261
      %266 = vset.pattern.permute.xlu0 0
      %267 = vperm.xlu0 %266, %v252
      %v268 = vpop.permute.xlu0 %267
      %271 = vset.pattern.permute.xlu0 0
      %272 = vperm.xlu0 %271, %v253
      %v273 = vpop.permute.xlu0 %272
      %v275 = vsub.f32 %v258, %v268
      %v276 = vsub.f32 %v262, %v268
      %v277 = vsub.f32 %v258, %v273
      %v278 = vsub.f32 %v262, %v273
      %v280 = vlaneseq
      %v281 = vshrl.u32 %v280, 7
      %v282 = vsub.s32 0, %v281
      %v283 = vrot.slane %v249, %v282
      %v284 = vlaneseq
      %v285 = vshrl.u32 %v284, 7
      %v286 = vsub.s32 1, %v285
      %v287 = vrot.slane %v249, %v286
      %290 = vset.pattern.permute.xlu0 1
      %291 = vperm.xlu0 %290, %v252
      %v292 = vpop.permute.xlu0 %291
      %294 = vset.pattern.permute.xlu0 1
      %295 = vperm.xlu0 %294, %v253
      %v296 = vpop.permute.xlu0 %295
      %v298 = vsub.f32 %v283, %v292
      %v299 = vsub.f32 %v287, %v292
      %v300 = vsub.f32 %v283, %v296
      %v301 = vsub.f32 %v287, %v296
      %v303 = vlaneseq
      %v304 = vshrl.u32 %v303, 7
      %v305 = vsub.s32 0, %v304
      %v306 = vrot.slane %v251, %v305
      %v307 = vlaneseq
      %v308 = vshrl.u32 %v307, 7
      %v309 = vsub.s32 1, %v308
      %v310 = vrot.slane %v251, %v309
      %313 = vset.pattern.permute.xlu0 2
      %314 = vperm.xlu0 %313, %v252
      %v315 = vpop.permute.xlu0 %314
      %317 = vset.pattern.permute.xlu0 2
      %318 = vperm.xlu0 %317, %v253
      %v319 = vpop.permute.xlu0 %318
      %v321 = vsub.f32 %v306, %v315
      %v322 = vsub.f32 %v310, %v315
      %v323 = vsub.f32 %v306, %v319
      %v324 = vsub.f32 %v310, %v319
      %v325 = vmul.f32 %v275, %v275
      %v326 = vmul.f32 %v276, %v276
      %v327 = vmul.f32 %v277, %v277
      %v328 = vmul.f32 %v278, %v278
      %v329 = vmul.f32 %v298, %v298
      %v330 = vmul.f32 %v299, %v299
      %v331 = vmul.f32 %v300, %v300
      %v332 = vmul.f32 %v301, %v301
      %v333 = vadd.f32 %v325, %v329
      %v334 = vadd.f32 %v326, %v330
      %v335 = vadd.f32 %v327, %v331
      %v336 = vadd.f32 %v328, %v332
      %v337 = vmul.f32 %v321, %v321
      %v338 = vmul.f32 %v322, %v322
      %v339 = vmul.f32 %v323, %v323
      %v340 = vmul.f32 %v324, %v324
      %v341 = vadd.f32 %v333, %v337
      %v342 = vadd.f32 %v334, %v338
      %v343 = vadd.f32 %v335, %v339
      %v344 = vadd.f32 %v336, %v340
      %345 = vset.pattern.permute.xlu0 3
      %346 = vperm.xlu0 %345, %v252
      %v347 = vpop.permute.xlu0 %346
      %349 = vset.pattern.permute.xlu0 3
      %350 = vperm.xlu0 %349, %v253
      %v351 = vpop.permute.xlu0 %350
      %v353 = vmul.f32 %v341, %v347
      %v354 = vmul.f32 %v342, %v347
      %v355 = vmul.f32 %v343, %v351
      %v356 = vmul.f32 %v344, %v351
      %357 = vset.pattern.permute.xlu0 4
      %358 = vperm.xlu0 %357, %v252
      %v359 = vpop.permute.xlu0 %358
      %361 = vset.pattern.permute.xlu0 4
      %362 = vperm.xlu0 %361, %v253
      %v363 = vpop.permute.xlu0 %362
      %v365 = vsub.f32 %v359, %v353
      %v366 = vsub.f32 %v359, %v354
      %v367 = vsub.f32 %v363, %v355
      %v368 = vsub.f32 %v363, %v356
      %v369 = vmax.f32 %v365, %v367
      %v370 = vrot.slane %v369, 4
      %v371 = vmax.f32 %v369, %v370
      %v372 = vrot.slane %v371, 2
      %v373 = vmax.f32 %v371, %v372
      %v374 = vrot.slane %v373, 1
      %v375 = vmax.f32 %v373, %v374
      %v376 = vmax.f32 %v366, %v368
      %v377 = vrot.slane %v376, 4
      %v378 = vmax.f32 %v376, %v377
      %v379 = vrot.slane %v378, 2
      %v380 = vmax.f32 %v378, %v379
      %v381 = vrot.slane %v380, 1
      %v382 = vmax.f32 %v380, %v381
      %v383 = vsub.f32 %v365, %v375
      %v384 = vsub.f32 %v366, %v382
      %v385 = vsub.f32 %v367, %v375
      %v386 = vsub.f32 %v368, %v382
      %v387 = vmul.f32 %v383, 1.442695
      %v388 = vpow.pop %v387
      %v389 = vmul.f32 %v384, 1.442695
      %v390 = vpow.pop %v389
      %v391 = vmul.f32 %v385, 1.442695
      %v392 = vpow.pop %v391
      %v393 = vmul.f32 %v386, 1.442695
      %v394 = vpow.pop %v393
      %v395 = vmul.f32 %v388, %v258
      %v396 = vmul.f32 %v390, %v262
      %v397 = vmul.f32 %v392, %v258
      %v398 = vmul.f32 %v394, %v262
      %v399 = vmul.f32 %v388, %v283
      %v400 = vmul.f32 %v390, %v287
      %v401 = vmul.f32 %v392, %v283
      %v402 = vmul.f32 %v394, %v287
      %v403 = vmul.f32 %v388, %v306
      %v404 = vmul.f32 %v390, %v310
      %v405 = vmul.f32 %v392, %v306
      %v406 = vmul.f32 %v394, %v310
      %v407 = vld [vmem:[%s236] sm:$0xff]
      %vm408 = vcmask 523264
      %v410 = vsel %vm408, %v407, 0
      %v412 = vand.u32 %v396, 4294901760
      %413 = vmatprep.subr.mxu0 %v412
      %v414 = vand.u32 %v395, 4294901760
      %415 = vmatpush1.msra.mxu0 %v414
      %v416 = vand.u32 %v398, 4294901760
      %417 = vmatprep.subr.mxu0 %v416
      %v418 = vand.u32 %v397, 4294901760
      %419 = vmatpush1.msra.mxu0 %v418
      %v420 = vand.u32 %v400, 4294901760
      %421 = vmatprep.subr.mxu0 %v420
      %v422 = vand.u32 %v399, 4294901760
      %423 = vmatpush1.msra.mxu0 %v422
      %v424 = vand.u32 %v402, 4294901760
      %425 = vmatprep.subr.mxu0 %v424
      %v426 = vand.u32 %v401, 4294901760
      %427 = vmatpush1.msra.mxu0 %v426
      %v428 = vand.u32 %v404, 4294901760
      %429 = vmatprep.subr.mxu0 %v428
      %v430 = vand.u32 %v403, 4294901760
      %431 = vmatpush1.msra.mxu0 %v430
      %v432 = vand.u32 %v406, 4294901760
      %433 = vmatprep.subr.mxu0 %v432
      %v434 = vand.u32 %v405, 4294901760
      %435 = vmatpush1.msra.mxu0 %v434
      %v436 = vand.u32 %v390, 4294901760
      %437 = vmatprep.subr.mxu0 %v436
      %v438 = vand.u32 %v388, 4294901760
      %439 = vmatpush1.msra.mxu0 %v438
      %v440 = vand.u32 %v394, 4294901760
      %441 = vmatprep.subr.mxu0 %v440
      %v442 = vand.u32 %v392, 4294901760
      %443 = vmatpush1.msra.mxu0 %v442
      %444 = vmatprep.subr.mxu0 0.0
      %445 = vmatpush1.msra.mxu0 0.0
      %446 = vmatprep.subr.mxu0 0.0
      %447 = vmatpush1.msra.mxu0 0.0
      %448 = vmatprep.subr.mxu0 0.0
      %449 = vmatpush1.msra.mxu0 0.0
      %450 = vmatprep.subr.mxu0 0.0
      %451 = vmatpush1.msra.mxu0 0.0
      %452 = vmatprep.subr.mxu0 0.0
      %453 = vmatpush1.msra.mxu0 0.0
      %454 = vmatprep.subr.mxu0 0.0
      %455 = vmatpush1.msra.mxu0 0.0
      %456 = vmatprep.subr.mxu0 0.0
      %457 = vmatpush1.msra.mxu0 0.0
      %458 = vmatprep.subr.mxu0 0.0
      %459 = vmatpush1.msra.mxu0 0.0
      %460 = vmatprep.subr.mxu0 0.0
      %461 = vmatpush1.msra.mxu0 0.0
      %462 = vmatprep.subr.mxu0 0.0
      %463 = vmatpush1.msra.mxu0 0.0
      %464 = vmatprep.subr.mxu0 0.0
      %465 = vmatpush1.msra.mxu0 0.0
      %466 = vmatprep.subr.mxu0 0.0
      %467 = vmatpush1.msra.mxu0 0.0
      %468 = vmatprep.subr.mxu0 0.0
      %469 = vmatpush1.msra.mxu0 0.0
      %470 = vmatprep.subr.mxu0 0.0
      %471 = vmatpush1.msra.mxu0 0.0
      %472 = vmatprep.subr.mxu0 0.0
      %473 = vmatpush1.msra.mxu0 0.0
      %474 = vmatprep.subr.mxu0 0.0
      %475 = vmatpush1.msra.mxu0 0.0
      %476 = vmatprep.subr.mxu0 0.0
      %477 = vmatpush1.msra.mxu0 0.0
      %478 = vmatprep.subr.mxu0 0.0
      %479 = vmatpush1.msra.mxu0 0.0
      %480 = vmatprep.subr.mxu0 0.0
      %481 = vmatpush1.msra.mxu0 0.0
      %482 = vmatprep.subr.mxu0 0.0
      %483 = vmatpush1.msra.mxu0 0.0
      %484 = vmatprep.subr.mxu0 0.0
      %485 = vmatpush1.msra.mxu0 0.0
      %486 = vmatprep.subr.mxu0 0.0
      %487 = vmatpush1.msra.mxu0 0.0
      %488 = vmatprep.subr.mxu0 0.0
      %489 = vmatpush1.msra.mxu0 0.0
      %490 = vmatprep.subr.mxu0 0.0
      %491 = vmatpush1.msra.mxu0 0.0
      %492 = vmatprep.mubr.f32.mxu0 0.0
      %v493 = vand.u32 %v410, 4294901760
      %v494 = vsub.f32 %v410, %v493
      %v495 = vand.u32 %v494, 4294901760
      %v496 = vsub.f32 %v494, %v495
      %v497 = vand.u32 %v496, 4294901760
      %498 = vmatmul.mubr.f32.gmra.mrb[0].mxu0 %v497
      %v499 = vpop.f32.mrb[0].mxu0
      %v500 = vadd.f32 0.0, %v499
      %v501 = vpop.f32.mrb[0].mxu0
      %v502 = vadd.f32 0.0, %v501
      %503 = vdwg.mxu0
      %v504 = vand.u32 %v396, 4294901760
      %v505 = vsub.f32 %v396, %v504
      %v506 = vand.u32 %v505, 4294901760
      %v507 = vsub.f32 %v505, %v506
      %v508 = vand.u32 %v507, 4294901760
      %509 = vmatprep.subr.mxu0 %v508
      %v510 = vand.u32 %v395, 4294901760
      %v511 = vsub.f32 %v395, %v510
      %v512 = vand.u32 %v511, 4294901760
      %v513 = vsub.f32 %v511, %v512
      %v514 = vand.u32 %v513, 4294901760
      %515 = vmatpush1.msra.mxu0 %v514
      %v516 = vand.u32 %v398, 4294901760
      %v517 = vsub.f32 %v398, %v516
      %v518 = vand.u32 %v517, 4294901760
      %v519 = vsub.f32 %v517, %v518
      %v520 = vand.u32 %v519, 4294901760
      %521 = vmatprep.subr.mxu0 %v520
      %v522 = vand.u32 %v397, 4294901760
      %v523 = vsub.f32 %v397, %v522
      %v524 = vand.u32 %v523, 4294901760
      %v525 = vsub.f32 %v523, %v524
      %v526 = vand.u32 %v525, 4294901760
      %527 = vmatpush1.msra.mxu0 %v526
      %v528 = vand.u32 %v400, 4294901760
      %v529 = vsub.f32 %v400, %v528
      %v530 = vand.u32 %v529, 4294901760
      %v531 = vsub.f32 %v529, %v530
      %v532 = vand.u32 %v531, 4294901760
      %533 = vmatprep.subr.mxu0 %v532
      %v534 = vand.u32 %v399, 4294901760
      %v535 = vsub.f32 %v399, %v534
      %v536 = vand.u32 %v535, 4294901760
      %v537 = vsub.f32 %v535, %v536
      %v538 = vand.u32 %v537, 4294901760
      %539 = vmatpush1.msra.mxu0 %v538
      %v540 = vand.u32 %v402, 4294901760
      %v541 = vsub.f32 %v402, %v540
      %v542 = vand.u32 %v541, 4294901760
      %v543 = vsub.f32 %v541, %v542
      %v544 = vand.u32 %v543, 4294901760
      %545 = vmatprep.subr.mxu0 %v544
      %v546 = vand.u32 %v401, 4294901760
      %v547 = vsub.f32 %v401, %v546
      %v548 = vand.u32 %v547, 4294901760
      %v549 = vsub.f32 %v547, %v548
      %v550 = vand.u32 %v549, 4294901760
      %551 = vmatpush1.msra.mxu0 %v550
      %v552 = vand.u32 %v404, 4294901760
      %v553 = vsub.f32 %v404, %v552
      %v554 = vand.u32 %v553, 4294901760
      %v555 = vsub.f32 %v553, %v554
      %v556 = vand.u32 %v555, 4294901760
      %557 = vmatprep.subr.mxu0 %v556
      %v558 = vand.u32 %v403, 4294901760
      %v559 = vsub.f32 %v403, %v558
      %v560 = vand.u32 %v559, 4294901760
      %v561 = vsub.f32 %v559, %v560
      %v562 = vand.u32 %v561, 4294901760
      %563 = vmatpush1.msra.mxu0 %v562
      %v564 = vand.u32 %v406, 4294901760
      %v565 = vsub.f32 %v406, %v564
      %v566 = vand.u32 %v565, 4294901760
      %v567 = vsub.f32 %v565, %v566
      %v568 = vand.u32 %v567, 4294901760
      %569 = vmatprep.subr.mxu0 %v568
      %v570 = vand.u32 %v405, 4294901760
      %v571 = vsub.f32 %v405, %v570
      %v572 = vand.u32 %v571, 4294901760
      %v573 = vsub.f32 %v571, %v572
      %v574 = vand.u32 %v573, 4294901760
      %575 = vmatpush1.msra.mxu0 %v574
      %v576 = vand.u32 %v390, 4294901760
      %v577 = vsub.f32 %v390, %v576
      %v578 = vand.u32 %v577, 4294901760
      %v579 = vsub.f32 %v577, %v578
      %v580 = vand.u32 %v579, 4294901760
      %581 = vmatprep.subr.mxu0 %v580
      %v582 = vand.u32 %v388, 4294901760
      %v583 = vsub.f32 %v388, %v582
      %v584 = vand.u32 %v583, 4294901760
      %v585 = vsub.f32 %v583, %v584
      %v586 = vand.u32 %v585, 4294901760
      %587 = vmatpush1.msra.mxu0 %v586
      %v588 = vand.u32 %v394, 4294901760
      %v589 = vsub.f32 %v394, %v588
      %v590 = vand.u32 %v589, 4294901760
      %v591 = vsub.f32 %v589, %v590
      %v592 = vand.u32 %v591, 4294901760
      %593 = vmatprep.subr.mxu0 %v592
      %v594 = vand.u32 %v392, 4294901760
      %v595 = vsub.f32 %v392, %v594
      %v596 = vand.u32 %v595, 4294901760
      %v597 = vsub.f32 %v595, %v596
      %v598 = vand.u32 %v597, 4294901760
      %599 = vmatpush1.msra.mxu0 %v598
      %600 = vmatprep.subr.mxu0 0.0
      %601 = vmatpush1.msra.mxu0 0.0
      %602 = vmatprep.subr.mxu0 0.0
      %603 = vmatpush1.msra.mxu0 0.0
      %604 = vmatprep.subr.mxu0 0.0
      %605 = vmatpush1.msra.mxu0 0.0
      %606 = vmatprep.subr.mxu0 0.0
      %607 = vmatpush1.msra.mxu0 0.0
      %608 = vmatprep.subr.mxu0 0.0
      %609 = vmatpush1.msra.mxu0 0.0
      %610 = vmatprep.subr.mxu0 0.0
      %611 = vmatpush1.msra.mxu0 0.0
      %612 = vmatprep.subr.mxu0 0.0
      %613 = vmatpush1.msra.mxu0 0.0
      %614 = vmatprep.subr.mxu0 0.0
      %615 = vmatpush1.msra.mxu0 0.0
      %616 = vmatprep.subr.mxu0 0.0
      %617 = vmatpush1.msra.mxu0 0.0
      %618 = vmatprep.subr.mxu0 0.0
      %619 = vmatpush1.msra.mxu0 0.0
      %620 = vmatprep.subr.mxu0 0.0
      %621 = vmatpush1.msra.mxu0 0.0
      %622 = vmatprep.subr.mxu0 0.0
      %623 = vmatpush1.msra.mxu0 0.0
      %624 = vmatprep.subr.mxu0 0.0
      %625 = vmatpush1.msra.mxu0 0.0
      %626 = vmatprep.subr.mxu0 0.0
      %627 = vmatpush1.msra.mxu0 0.0
      %628 = vmatprep.subr.mxu0 0.0
      %629 = vmatpush1.msra.mxu0 0.0
      %630 = vmatprep.subr.mxu0 0.0
      %631 = vmatpush1.msra.mxu0 0.0
      %632 = vmatprep.subr.mxu0 0.0
      %633 = vmatpush1.msra.mxu0 0.0
      %634 = vmatprep.subr.mxu0 0.0
      %635 = vmatpush1.msra.mxu0 0.0
      %636 = vmatprep.subr.mxu0 0.0
      %637 = vmatpush1.msra.mxu0 0.0
      %638 = vmatprep.subr.mxu0 0.0
      %639 = vmatpush1.msra.mxu0 0.0
      %640 = vmatprep.subr.mxu0 0.0
      %641 = vmatpush1.msra.mxu0 0.0
      %642 = vmatprep.subr.mxu0 0.0
      %643 = vmatpush1.msra.mxu0 0.0
      %644 = vmatprep.subr.mxu0 0.0
      %645 = vmatpush1.msra.mxu0 0.0
      %646 = vmatprep.subr.mxu0 0.0
      %647 = vmatpush1.msra.mxu0 0.0
      %648 = vmatprep.mubr.f32.mxu0 0.0
      %v649 = vand.u32 %v410, 4294901760
      %650 = vmatmul.mubr.f32.gmra.mrb[0].mxu0 %v649
      %v651 = vpop.f32.mrb[0].mxu0
      %v652 = vadd.f32 %v500, %v651
      %v653 = vpop.f32.mrb[0].mxu0
      %v654 = vadd.f32 %v502, %v653
      %655 = vdwg.mxu0
      %v656 = vand.u32 %v396, 4294901760
      %v657 = vsub.f32 %v396, %v656
      %658 = vmatprep.subr.mxu0 %v657
      %v659 = vand.u32 %v395, 4294901760
      %v660 = vsub.f32 %v395, %v659
      %661 = vmatpush1.msra.mxu0 %v660
      %v662 = vand.u32 %v398, 4294901760
      %v663 = vsub.f32 %v398, %v662
      %664 = vmatprep.subr.mxu0 %v663
      %v665 = vand.u32 %v397, 4294901760
      %v666 = vsub.f32 %v397, %v665
      %667 = vmatpush1.msra.mxu0 %v666
      %v668 = vand.u32 %v400, 4294901760
      %v669 = vsub.f32 %v400, %v668
      %670 = vmatprep.subr.mxu0 %v669
      %v671 = vand.u32 %v399, 4294901760
      %v672 = vsub.f32 %v399, %v671
      %673 = vmatpush1.msra.mxu0 %v672
      %v674 = vand.u32 %v402, 4294901760
      %v675 = vsub.f32 %v402, %v674
      %676 = vmatprep.subr.mxu0 %v675
      %v677 = vand.u32 %v401, 4294901760
      %v678 = vsub.f32 %v401, %v677
      %679 = vmatpush1.msra.mxu0 %v678
      %v680 = vand.u32 %v404, 4294901760
      %v681 = vsub.f32 %v404, %v680
      %682 = vmatprep.subr.mxu0 %v681
      %v683 = vand.u32 %v403, 4294901760
      %v684 = vsub.f32 %v403, %v683
      %685 = vmatpush1.msra.mxu0 %v684
      %v686 = vand.u32 %v406, 4294901760
      %v687 = vsub.f32 %v406, %v686
      %688 = vmatprep.subr.mxu0 %v687
      %v689 = vand.u32 %v405, 4294901760
      %v690 = vsub.f32 %v405, %v689
      %691 = vmatpush1.msra.mxu0 %v690
      %v692 = vand.u32 %v390, 4294901760
      %v693 = vsub.f32 %v390, %v692
      %694 = vmatprep.subr.mxu0 %v693
      %v695 = vand.u32 %v388, 4294901760
      %v696 = vsub.f32 %v388, %v695
      %697 = vmatpush1.msra.mxu0 %v696
      %v698 = vand.u32 %v394, 4294901760
      %v699 = vsub.f32 %v394, %v698
      %700 = vmatprep.subr.mxu0 %v699
      %v701 = vand.u32 %v392, 4294901760
      %v702 = vsub.f32 %v392, %v701
      %703 = vmatpush1.msra.mxu0 %v702
      %704 = vmatprep.subr.mxu0 0.0
      %705 = vmatpush1.msra.mxu0 0.0
      %706 = vmatprep.subr.mxu0 0.0
      %707 = vmatpush1.msra.mxu0 0.0
      %708 = vmatprep.subr.mxu0 0.0
      %709 = vmatpush1.msra.mxu0 0.0
      %710 = vmatprep.subr.mxu0 0.0
      %711 = vmatpush1.msra.mxu0 0.0
      %712 = vmatprep.subr.mxu0 0.0
      %713 = vmatpush1.msra.mxu0 0.0
      %714 = vmatprep.subr.mxu0 0.0
      %715 = vmatpush1.msra.mxu0 0.0
      %716 = vmatprep.subr.mxu0 0.0
      %717 = vmatpush1.msra.mxu0 0.0
      %718 = vmatprep.subr.mxu0 0.0
      %719 = vmatpush1.msra.mxu0 0.0
      %720 = vmatprep.subr.mxu0 0.0
      %721 = vmatpush1.msra.mxu0 0.0
      %722 = vmatprep.subr.mxu0 0.0
      %723 = vmatpush1.msra.mxu0 0.0
      %724 = vmatprep.subr.mxu0 0.0
      %725 = vmatpush1.msra.mxu0 0.0
      %726 = vmatprep.subr.mxu0 0.0
      %727 = vmatpush1.msra.mxu0 0.0
      %728 = vmatprep.subr.mxu0 0.0
      %729 = vmatpush1.msra.mxu0 0.0
      %730 = vmatprep.subr.mxu0 0.0
      %731 = vmatpush1.msra.mxu0 0.0
      %732 = vmatprep.subr.mxu0 0.0
      %733 = vmatpush1.msra.mxu0 0.0
      %734 = vmatprep.subr.mxu0 0.0
      %735 = vmatpush1.msra.mxu0 0.0
      %736 = vmatprep.subr.mxu0 0.0
      %737 = vmatpush1.msra.mxu0 0.0
      %738 = vmatprep.subr.mxu0 0.0
      %739 = vmatpush1.msra.mxu0 0.0
      %740 = vmatprep.subr.mxu0 0.0
      %741 = vmatpush1.msra.mxu0 0.0
      %742 = vmatprep.subr.mxu0 0.0
      %743 = vmatpush1.msra.mxu0 0.0
      %744 = vmatprep.subr.mxu0 0.0
      %745 = vmatpush1.msra.mxu0 0.0
      %746 = vmatprep.subr.mxu0 0.0
      %747 = vmatpush1.msra.mxu0 0.0
      %748 = vmatprep.subr.mxu0 0.0
      %749 = vmatpush1.msra.mxu0 0.0
      %750 = vmatprep.subr.mxu0 0.0
      %751 = vmatpush1.msra.mxu0 0.0
      %752 = vmatprep.mubr.f32.mxu0 0.0
      %v753 = vand.u32 %v410, 4294901760
      %v754 = vsub.f32 %v410, %v753
      %755 = vmatmul.mubr.f32.gmra.mrb[0].mxu0 %v754
      %v756 = vpop.f32.mrb[0].mxu0
      %v757 = vadd.f32 %v652, %v756
      %v758 = vpop.f32.mrb[0].mxu0
      %v759 = vadd.f32 %v654, %v758
      %760 = vdwg.mxu0
      %v761 = vand.u32 %v396, 4294901760
      %762 = vmatprep.subr.mxu0 %v761
      %v763 = vand.u32 %v395, 4294901760
      %764 = vmatpush1.msra.mxu0 %v763
      %v765 = vand.u32 %v398, 4294901760
      %766 = vmatprep.subr.mxu0 %v765
      %v767 = vand.u32 %v397, 4294901760
      %768 = vmatpush1.msra.mxu0 %v767
      %v769 = vand.u32 %v400, 4294901760
      %770 = vmatprep.subr.mxu0 %v769
      %v771 = vand.u32 %v399, 4294901760
      %772 = vmatpush1.msra.mxu0 %v771
      %v773 = vand.u32 %v402, 4294901760
      %774 = vmatprep.subr.mxu0 %v773
      %v775 = vand.u32 %v401, 4294901760
      %776 = vmatpush1.msra.mxu0 %v775
      %v777 = vand.u32 %v404, 4294901760
      %778 = vmatprep.subr.mxu0 %v777
      %v779 = vand.u32 %v403, 4294901760
      %780 = vmatpush1.msra.mxu0 %v779
      %v781 = vand.u32 %v406, 4294901760
      %782 = vmatprep.subr.mxu0 %v781
      %v783 = vand.u32 %v405, 4294901760
      %784 = vmatpush1.msra.mxu0 %v783
      %v785 = vand.u32 %v390, 4294901760
      %786 = vmatprep.subr.mxu0 %v785
      %v787 = vand.u32 %v388, 4294901760
      %788 = vmatpush1.msra.mxu0 %v787
      %v789 = vand.u32 %v394, 4294901760
      %790 = vmatprep.subr.mxu0 %v789
      %v791 = vand.u32 %v392, 4294901760
      %792 = vmatpush1.msra.mxu0 %v791
      %793 = vmatprep.subr.mxu0 0.0
      %794 = vmatpush1.msra.mxu0 0.0
      %795 = vmatprep.subr.mxu0 0.0
      %796 = vmatpush1.msra.mxu0 0.0
      %797 = vmatprep.subr.mxu0 0.0
      %798 = vmatpush1.msra.mxu0 0.0
      %799 = vmatprep.subr.mxu0 0.0
      %800 = vmatpush1.msra.mxu0 0.0
      %801 = vmatprep.subr.mxu0 0.0
      %802 = vmatpush1.msra.mxu0 0.0
      %803 = vmatprep.subr.mxu0 0.0
      %804 = vmatpush1.msra.mxu0 0.0
      %805 = vmatprep.subr.mxu0 0.0
      %806 = vmatpush1.msra.mxu0 0.0
      %807 = vmatprep.subr.mxu0 0.0
      %808 = vmatpush1.msra.mxu0 0.0
      %809 = vmatprep.subr.mxu0 0.0
      %810 = vmatpush1.msra.mxu0 0.0
      %811 = vmatprep.subr.mxu0 0.0
      %812 = vmatpush1.msra.mxu0 0.0
      %813 = vmatprep.subr.mxu0 0.0
      %814 = vmatpush1.msra.mxu0 0.0
      %815 = vmatprep.subr.mxu0 0.0
      %816 = vmatpush1.msra.mxu0 0.0
      %817 = vmatprep.subr.mxu0 0.0
      %818 = vmatpush1.msra.mxu0 0.0
      %819 = vmatprep.subr.mxu0 0.0
      %820 = vmatpush1.msra.mxu0 0.0
      %821 = vmatprep.subr.mxu0 0.0
      %822 = vmatpush1.msra.mxu0 0.0
      %823 = vmatprep.subr.mxu0 0.0
      %824 = vmatpush1.msra.mxu0 0.0
      %825 = vmatprep.subr.mxu0 0.0
      %826 = vmatpush1.msra.mxu0 0.0
      %827 = vmatprep.subr.mxu0 0.0
      %828 = vmatpush1.msra.mxu0 0.0
      %829 = vmatprep.subr.mxu0 0.0
      %830 = vmatpush1.msra.mxu0 0.0
      %831 = vmatprep.subr.mxu0 0.0
      %832 = vmatpush1.msra.mxu0 0.0
      %833 = vmatprep.subr.mxu0 0.0
      %834 = vmatpush1.msra.mxu0 0.0
      %835 = vmatprep.subr.mxu0 0.0
      %836 = vmatpush1.msra.mxu0 0.0
      %837 = vmatprep.subr.mxu0 0.0
      %838 = vmatpush1.msra.mxu0 0.0
      %839 = vmatprep.subr.mxu0 0.0
      %840 = vmatpush1.msra.mxu0 0.0
      %841 = vmatprep.mubr.f32.mxu0 0.0
      %v842 = vand.u32 %v410, 4294901760
      %v843 = vsub.f32 %v410, %v842
      %v844 = vand.u32 %v843, 4294901760
      %845 = vmatmul.mubr.f32.gmra.mrb[0].mxu0 %v844
      %v846 = vpop.f32.mrb[0].mxu0
      %v847 = vadd.f32 %v757, %v846
      %v848 = vpop.f32.mrb[0].mxu0
      %v849 = vadd.f32 %v759, %v848
      %850 = vdwg.mxu0
      %v851 = vand.u32 %v396, 4294901760
      %v852 = vsub.f32 %v396, %v851
      %v853 = vand.u32 %v852, 4294901760
      %854 = vmatprep.subr.mxu0 %v853
      %v855 = vand.u32 %v395, 4294901760
      %v856 = vsub.f32 %v395, %v855
      %v857 = vand.u32 %v856, 4294901760
      %858 = vmatpush1.msra.mxu0 %v857
      %v859 = vand.u32 %v398, 4294901760
      %v860 = vsub.f32 %v398, %v859
      %v861 = vand.u32 %v860, 4294901760
      %862 = vmatprep.subr.mxu0 %v861
      %v863 = vand.u32 %v397, 4294901760
      %v864 = vsub.f32 %v397, %v863
      %v865 = vand.u32 %v864, 4294901760
      %866 = vmatpush1.msra.mxu0 %v865
      %v867 = vand.u32 %v400, 4294901760
      %v868 = vsub.f32 %v400, %v867
      %v869 = vand.u32 %v868, 4294901760
      %870 = vmatprep.subr.mxu0 %v869
      %v871 = vand.u32 %v399, 4294901760
      %v872 = vsub.f32 %v399, %v871
      %v873 = vand.u32 %v872, 4294901760
      %874 = vmatpush1.msra.mxu0 %v873
      %v875 = vand.u32 %v402, 4294901760
      %v876 = vsub.f32 %v402, %v875
      %v877 = vand.u32 %v876, 4294901760
      %878 = vmatprep.subr.mxu0 %v877
      %v879 = vand.u32 %v401, 4294901760
      %v880 = vsub.f32 %v401, %v879
      %v881 = vand.u32 %v880, 4294901760
      %882 = vmatpush1.msra.mxu0 %v881
      %v883 = vand.u32 %v404, 4294901760
      %v884 = vsub.f32 %v404, %v883
      %v885 = vand.u32 %v884, 4294901760
      %886 = vmatprep.subr.mxu0 %v885
      %v887 = vand.u32 %v403, 4294901760
      %v888 = vsub.f32 %v403, %v887
      %v889 = vand.u32 %v888, 4294901760
      %890 = vmatpush1.msra.mxu0 %v889
      %v891 = vand.u32 %v406, 4294901760
      %v892 = vsub.f32 %v406, %v891
      %v893 = vand.u32 %v892, 4294901760
      %894 = vmatprep.subr.mxu0 %v893
      %v895 = vand.u32 %v405, 4294901760
      %v896 = vsub.f32 %v405, %v895
      %v897 = vand.u32 %v896, 4294901760
      %898 = vmatpush1.msra.mxu0 %v897
      %v899 = vand.u32 %v390, 4294901760
      %v900 = vsub.f32 %v390, %v899
      %v901 = vand.u32 %v900, 4294901760
      %902 = vmatprep.subr.mxu0 %v901
      %v903 = vand.u32 %v388, 4294901760
      %v904 = vsub.f32 %v388, %v903
      %v905 = vand.u32 %v904, 4294901760
      %906 = vmatpush1.msra.mxu0 %v905
      %v907 = vand.u32 %v394, 4294901760
      %v908 = vsub.f32 %v394, %v907
      %v909 = vand.u32 %v908, 4294901760
      %910 = vmatprep.subr.mxu0 %v909
      %v911 = vand.u32 %v392, 4294901760
      %v912 = vsub.f32 %v392, %v911
      %v913 = vand.u32 %v912, 4294901760
      %914 = vmatpush1.msra.mxu0 %v913
      %915 = vmatprep.subr.mxu0 0.0
      %916 = vmatpush1.msra.mxu0 0.0
      %917 = vmatprep.subr.mxu0 0.0
      %918 = vmatpush1.msra.mxu0 0.0
      %919 = vmatprep.subr.mxu0 0.0
      %920 = vmatpush1.msra.mxu0 0.0
      %921 = vmatprep.subr.mxu0 0.0
      %922 = vmatpush1.msra.mxu0 0.0
      %923 = vmatprep.subr.mxu0 0.0
      %924 = vmatpush1.msra.mxu0 0.0
      %925 = vmatprep.subr.mxu0 0.0
      %926 = vmatpush1.msra.mxu0 0.0
      %927 = vmatprep.subr.mxu0 0.0
      %928 = vmatpush1.msra.mxu0 0.0
      %929 = vmatprep.subr.mxu0 0.0
      %930 = vmatpush1.msra.mxu0 0.0
      %931 = vmatprep.subr.mxu0 0.0
      %932 = vmatpush1.msra.mxu0 0.0
      %933 = vmatprep.subr.mxu0 0.0
      %934 = vmatpush1.msra.mxu0 0.0
      %935 = vmatprep.subr.mxu0 0.0
      %936 = vmatpush1.msra.mxu0 0.0
      %937 = vmatprep.subr.mxu0 0.0
      %938 = vmatpush1.msra.mxu0 0.0
      %939 = vmatprep.subr.mxu0 0.0
      %940 = vmatpush1.msra.mxu0 0.0
      %941 = vmatprep.subr.mxu0 0.0
      %942 = vmatpush1.msra.mxu0 0.0
      %943 = vmatprep.subr.mxu0 0.0
      %944 = vmatpush1.msra.mxu0 0.0
      %945 = vmatprep.subr.mxu0 0.0
      %946 = vmatpush1.msra.mxu0 0.0
      %947 = vmatprep.subr.mxu0 0.0
      %948 = vmatpush1.msra.mxu0 0.0
      %949 = vmatprep.subr.mxu0 0.0
      %950 = vmatpush1.msra.mxu0 0.0
      %951 = vmatprep.subr.mxu0 0.0
      %952 = vmatpush1.msra.mxu0 0.0
      %953 = vmatprep.subr.mxu0 0.0
      %954 = vmatpush1.msra.mxu0 0.0
      %955 = vmatprep.subr.mxu0 0.0
      %956 = vmatpush1.msra.mxu0 0.0
      %957 = vmatprep.subr.mxu0 0.0
      %958 = vmatpush1.msra.mxu0 0.0
      %959 = vmatprep.subr.mxu0 0.0
      %960 = vmatpush1.msra.mxu0 0.0
      %961 = vmatprep.subr.mxu0 0.0
      %962 = vmatpush1.msra.mxu0 0.0
      %963 = vmatprep.mubr.f32.mxu0 0.0
      %v964 = vand.u32 %v410, 4294901760
      %965 = vmatmul.mubr.f32.gmra.mrb[0].mxu0 %v964
      %v966 = vpop.f32.mrb[0].mxu0
      %v967 = vadd.f32 %v847, %v966
      %v968 = vpop.f32.mrb[0].mxu0
      %v969 = vadd.f32 %v849, %v968
      %970 = vdwg.mxu0
      %v971 = vand.u32 %v396, 4294901760
      %972 = vmatprep.subr.mxu0 %v971
      %v973 = vand.u32 %v395, 4294901760
      %974 = vmatpush1.msra.mxu0 %v973
      %v975 = vand.u32 %v398, 4294901760
      %976 = vmatprep.subr.mxu0 %v975
      %v977 = vand.u32 %v397, 4294901760
      %978 = vmatpush1.msra.mxu0 %v977
      %v979 = vand.u32 %v400, 4294901760
      %980 = vmatprep.subr.mxu0 %v979
      %v981 = vand.u32 %v399, 4294901760
      %982 = vmatpush1.msra.mxu0 %v981
      %v983 = vand.u32 %v402, 4294901760
      %984 = vmatprep.subr.mxu0 %v983
      %v985 = vand.u32 %v401, 4294901760
      %986 = vmatpush1.msra.mxu0 %v985
      %v987 = vand.u32 %v404, 4294901760
      %988 = vmatprep.subr.mxu0 %v987
      %v989 = vand.u32 %v403, 4294901760
      %990 = vmatpush1.msra.mxu0 %v989
      %v991 = vand.u32 %v406, 4294901760
      %992 = vmatprep.subr.mxu0 %v991
      %v993 = vand.u32 %v405, 4294901760
      %994 = vmatpush1.msra.mxu0 %v993
      %v995 = vand.u32 %v390, 4294901760
      %996 = vmatprep.subr.mxu0 %v995
      %v997 = vand.u32 %v388, 4294901760
      %998 = vmatpush1.msra.mxu0 %v997
      %v999 = vand.u32 %v394, 4294901760
      %1000 = vmatprep.subr.mxu0 %v999
      %v1001 = vand.u32 %v392, 4294901760
      %1002 = vmatpush1.msra.mxu0 %v1001
      %1003 = vmatprep.subr.mxu0 0.0
      %1004 = vmatpush1.msra.mxu0 0.0
      %1005 = vmatprep.subr.mxu0 0.0
      %1006 = vmatpush1.msra.mxu0 0.0
      %1007 = vmatprep.subr.mxu0 0.0
      %1008 = vmatpush1.msra.mxu0 0.0
      %1009 = vmatprep.subr.mxu0 0.0
      %1010 = vmatpush1.msra.mxu0 0.0
      %1011 = vmatprep.subr.mxu0 0.0
      %1012 = vmatpush1.msra.mxu0 0.0
      %1013 = vmatprep.subr.mxu0 0.0
      %1014 = vmatpush1.msra.mxu0 0.0
      %1015 = vmatprep.subr.mxu0 0.0
      %1016 = vmatpush1.msra.mxu0 0.0
      %1017 = vmatprep.subr.mxu0 0.0
      %1018 = vmatpush1.msra.mxu0 0.0
      %1019 = vmatprep.subr.mxu0 0.0
      %1020 = vmatpush1.msra.mxu0 0.0
      %1021 = vmatprep.subr.mxu0 0.0
      %1022 = vmatpush1.msra.mxu0 0.0
      %1023 = vmatprep.subr.mxu0 0.0
      %1024 = vmatpush1.msra.mxu0 0.0
      %1025 = vmatprep.subr.mxu0 0.0
      %1026 = vmatpush1.msra.mxu0 0.0
      %1027 = vmatprep.subr.mxu0 0.0
      %1028 = vmatpush1.msra.mxu0 0.0
      %1029 = vmatprep.subr.mxu0 0.0
      %1030 = vmatpush1.msra.mxu0 0.0
      %1031 = vmatprep.subr.mxu0 0.0
      %1032 = vmatpush1.msra.mxu0 0.0
      %1033 = vmatprep.subr.mxu0 0.0
      %1034 = vmatpush1.msra.mxu0 0.0
      %1035 = vmatprep.subr.mxu0 0.0
      %1036 = vmatpush1.msra.mxu0 0.0
      %1037 = vmatprep.subr.mxu0 0.0
      %1038 = vmatpush1.msra.mxu0 0.0
      %1039 = vmatprep.subr.mxu0 0.0
      %1040 = vmatpush1.msra.mxu0 0.0
      %1041 = vmatprep.subr.mxu0 0.0
      %1042 = vmatpush1.msra.mxu0 0.0
      %1043 = vmatprep.subr.mxu0 0.0
      %1044 = vmatpush1.msra.mxu0 0.0
      %1045 = vmatprep.subr.mxu0 0.0
      %1046 = vmatpush1.msra.mxu0 0.0
      %1047 = vmatprep.subr.mxu0 0.0
      %1048 = vmatpush1.msra.mxu0 0.0
      %1049 = vmatprep.subr.mxu0 0.0
      %1050 = vmatpush1.msra.mxu0 0.0
      %1051 = vmatprep.mubr.f32.mxu0 0.0
      %v1052 = vand.u32 %v410, 4294901760
      %1053 = vmatmul.mubr.f32.gmra.mrb[0].mxu0 %v1052
      %v1054 = vpop.f32.mrb[0].mxu0
      %v1055 = vadd.f32 %v967, %v1054
      %v1056 = vpop.f32.mrb[0].mxu0
      %v1057 = vadd.f32 %v969, %v1056
      %1058 = vdwg.mxu0
      %v1059 = vrcp.pop %v1055
      %v1060 = vmul.f32 1.0, %v1059
      %v1061 = vrcp.pop %v1057
      %v1062 = vmul.f32 1.0, %v1061
      %v1063 = vlaneseq
      %v1064 = vshrl.u32 %v1063, 7
      %v1065 = vsub.s32 3, %v1064
      %v1066 = vrot.slane %v1060, %v1065
      %v1067 = vlaneseq
      %v1068 = vshrl.u32 %v1067, 7
      %v1069 = vsub.s32 3, %v1068
      %v1070 = vrot.slane %v1062, %v1069
      %v1071 = vmul.f32 %v1055, %v1066
      %v1072 = vmul.f32 %v1057, %v1070
      %v1075 = vcombine.low %v1071, %v1072
      %1077 = vst [vmem:[%s245] sm:$0x77] %v1075
      %s1078 = smul.u32 2, %s18
      %p1079 = scmp.lt.s32.totalorder %s19, 1
      %s1080 = scalar_select %p1079, %s19, 1
      %p1081 = scmp.lt.s32.totalorder %s1078, 1
      %s1082 = scalar_select %p1081, %s1078, 1
      %s1083 = smul.addr %s1080, 2
      %s1084 = sadd.s32 %s1082, %s1083
      %s1085 = smul.addr %s1084, 4
      %s1086 = scalar_lea.vmem %s3, %s1085
      // Predicated region
      $region33: #{tpu_custom_call.1} parent=31 // pred_check
        %p1087 = pneg %p126
      $region34: #{tpu_custom_call.1} parent=31 // pred_check_branch
        %1089 = sbr.rel (%p1087) target = $region36
      $region35: #{tpu_custom_call.1} parent=31 // pred_region
        %s1090 = smul.u32 2, %s18
      $region36: #{tpu_custom_call.1} parent=31 // pred_fallthru
        _
    $region32: #{tpu_custom_call.1} parent=5 // pred_fallthru
      _
    %p1091 = scmp.le.s32.totalorder 2, %s9
    // Predicated region
    $region37: #{tpu_custom_call.1} parent=5 // pred_check
      %p1092 = pneg %p1091
    $region38: #{tpu_custom_call.1} parent=5 // pred_check_branch
      %1094 = sbr.rel (%p1092) target = $region40
    $region39: #{tpu_custom_call.1} parent=5 // pred_region
      %s1095 = ssub.s32 %s9, 2
      // Predicated region
      $region41: #{tpu_custom_call.1} parent=39 // pred_check
        %p1096 = pneg %p132
      $region42: #{tpu_custom_call.1} parent=39 // pred_check_branch
        %1098 = sbr.rel (%p1096) target = $region44
      $region43: #{tpu_custom_call.1} parent=39 // pred_region
        %s1099 = smul.u32 2, %s20
        %p1100 = scmp.lt.s32.totalorder %s21, 1
        %s1101 = scalar_select %p1100, %s21, 1
        %p1102 = scmp.lt.s32.totalorder %s1099, 1
        %s1103 = scalar_select %p1102, %s1099, 1
        %s1104 = smul.addr %s1101, 2
        %s1105 = sadd.s32 %s1103, %s1104
        %s1106 = smul.addr %s1105, 4
        %s1107 = scalar_lea.vmem %s3, %s1106
      $region44: #{tpu_custom_call.1} parent=39 // pred_fallthru
        _
    $region40: #{tpu_custom_call.1} parent=5 // pred_fallthru
      _
  $region6: #{tpu_custom_call.1} parent=0 // loop_footer
    %s13 = sadd.s32 1, %s9
  $region7: #{tpu_custom_call.1} parent=0 // loop_footer_branch
    %8 = sbr.rel target = $region3
  $region8: #{tpu_custom_call.1} parent=0 // loop_exit
    _

</llo_original>
